<compile_context>
chip_gen: v7x
topology: tpu7x:2x2x1
jax: 0.10.0
libtpu: 0.0.40
codegen_flags: <defaults>
</compile_context>

<pallas_src>
import jax
import jax.numpy as jnp
from jax.experimental import pallas as pl
from jax.experimental.pallas import tpu as pltpu


def _cprelu_kernel(alpha_ref, x_ref, o_ref):
    # alpha_ref : SMEM (2,) f32 -> [alpha_real, alpha_imag] (scalar-prefetched)
    # x_ref/o_ref : VMEM (1, 1, TILE_R, COLS) tile for grid point (half, n, t)
    a = alpha_ref[pl.program_id(0)]          # scalar pick on the scalar unit
    x = x_ref[...]
    a = a.astype(x.dtype)                    # native-dtype compute (bf16 stays bf16)
    o_ref[...] = jnp.where(x >= 0, x, a * x)


def _factor_lane_dense(K, max_cols=16384):
    """Split K = rows * cols with cols a multiple of 128 dividing K (lane-dense)."""
    if K % 128 != 0:
        # TODO(synk): pad odd half-sizes up to a multiple of 128 instead of using one
        # (lane-padded) full-width block per (n, half).
        return 1, K
    cols = 128
    while cols * 2 <= max_cols and K % (cols * 2) == 0:
        cols *= 2
    return K // cols, cols


def _pick_tile_rows(rows, cols, itemsize, target_bytes=2 * 1024 * 1024):
    """Largest row-tile whose block is ~target_bytes, satisfying the (8,128) rule
    (multiple of 8, or the full `rows` extent) and dividing `rows` exactly."""
    max_rows = max(1, target_bytes // (cols * itemsize))
    if rows <= max_rows:
        return rows                          # full second-to-last dim: always legal
    best = rows
    for d in range(8, max_rows + 1, 8):      # multiples of 8 that divide rows
        if rows % d == 0:
            best = d
    return best


def cprelu(x, alpha_real, alpha_imag):
    """Pallas implementation of cPReLU.forward for NCHW inputs (complex_axis=1)."""
    N, C, H, W = x.shape
    assert C % 2 == 0, "channel axis must be even (real|imag halves)"
    K = (C // 2) * H * W                     # elements per half per batch element
    itemsize = jnp.dtype(x.dtype).itemsize

    alphas = jnp.asarray([alpha_real, alpha_imag], dtype=jnp.float32)

    rows, cols = _factor_lane_dense(K)
    tile_rows = _pick_tile_rows(rows, cols, itemsize)

    # Free, contiguous reshape: channels split into [real | imag] along axis 1.
    x4 = x.reshape(N, 2, rows, cols)

    grid = (2, N, rows // tile_rows)         # (half, batch, row-tiles) — all parallel
    block = (1, 1, tile_rows, cols)
    idx = lambda h, n, t, alphas: (n, h, t, 0)

    grid_spec = pltpu.PrefetchScalarGridSpec(
        num_scalar_prefetch=1,               # alphas -> SMEM
        grid=grid,
        in_specs=[pl.BlockSpec(block, idx)],
        out_specs=pl.BlockSpec(block, idx),
    )

    out = pl.pallas_call(
        _cprelu_kernel,
        out_shape=jax.ShapeDtypeStruct((N, 2, rows, cols), x.dtype),
        grid_spec=grid_spec,
        compiler_params=pltpu.CompilerParams(
            dimension_semantics=("parallel", "parallel", "parallel")),
        cost_estimate=pl.CostEstimate(
            flops=x.size, transcendentals=0,
            bytes_accessed=2 * x.size * itemsize),
    )(alphas, x4)

    return out.reshape(N, C, H, W)


if __name__ == "__main__":
    key = jax.random.PRNGKey(0)
    N, C, H, W = 2, 4, 16, 16
    x = jax.random.normal(key, (N, C, H, W), dtype=jnp.float32)

    # Distinct alphas so the real/imag half selection is actually exercised.
    alpha_real = 0.25
    alpha_imag = 0.10

    out = jax.block_until_ready(cprelu(x, alpha_real, alpha_imag))

    # Pure-JAX reference (chunk -> per-half PReLU -> concat).
    real, imag = jnp.split(x, 2, axis=1)
    ref = jnp.concatenate(
        [jnp.where(real >= 0, real, alpha_real * real),
         jnp.where(imag >= 0, imag, alpha_imag * imag)],
        axis=1)

    assert out.shape == x.shape and out.dtype == x.dtype
    assert jnp.allclose(out, ref, atol=1e-6, rtol=1e-6)

    print("KERNEL_OK")
</pallas_src>

<mosaic_0001>
module attributes {stable_mosaic.version = 11 : i64} {
  func.func @_cprelu_kernel(%arg0: i32, %arg1: i32, %arg2: i32, %arg3: memref<2xf32, #tpu.memory_space<smem>>, %arg4: memref<1x1x1x512xf32, #tpu.memory_space<vmem>>, %arg5: memref<1x1x1x512xf32, #tpu.memory_space<vmem>>) attributes {dimension_semantics = [#tpu.dimension_semantics<parallel>, #tpu.dimension_semantics<parallel>, #tpu.dimension_semantics<parallel>], iteration_bounds = array<i64: 2, 2, 1>, scalar_prefetch = 1 : i64, scratch_operands = 0 : i64, tpu.core_type = #tpu.core_type<tc>, window_params = [{transform_indices = @transform_0, window_bounds = array<i64: 1, 1, 1, 512>}, {transform_indices = @transform_1, window_bounds = array<i64: 1, 1, 1, 512>}]} {
    %0 = arith.index_cast %arg0 : i32 to index
    %1 = memref.load %arg3[%0] : memref<2xf32, #tpu.memory_space<smem>>
    %c0 = arith.constant 0 : index
    %c0_0 = arith.constant 0 : index
    %c0_1 = arith.constant 0 : index
    %c0_2 = arith.constant 0 : index
    %2 = vector.load %arg4[%c0, %c0_0, %c0_1, %c0_2] : memref<1x1x1x512xf32, #tpu.memory_space<vmem>>, vector<1x1x1x512xf32>
    %cst = arith.constant 0.000000e+00 : f32
    %3 = vector.broadcast %cst : f32 to vector<1x1x1x512xf32>
    %4 = arith.cmpf oge, %2, %3 : vector<1x1x1x512xf32>
    %5 = vector.broadcast %1 : f32 to vector<1x1x1x512xf32>
    %6 = arith.mulf %5, %2 : vector<1x1x1x512xf32>
    %7 = arith.select %4, %2, %6 : vector<1x1x1x512xi1>, vector<1x1x1x512xf32>
    %c0_3 = arith.constant 0 : index
    %c0_4 = arith.constant 0 : index
    %c0_5 = arith.constant 0 : index
    %c0_6 = arith.constant 0 : index
    %8 = vector.load %arg5[%c0_3, %c0_4, %c0_5, %c0_6] : memref<1x1x1x512xf32, #tpu.memory_space<vmem>>, vector<1x1x1x512xf32>
    tpu.vector_store %arg5[%c0_3, %c0_4, %c0_5, %c0_6], %7 {strides = array<i32>} : memref<1x1x1x512xf32, #tpu.memory_space<vmem>>, vector<1x1x1x512xf32>,
    return
  }
  func.func @transform_0(%arg0: i32, %arg1: i32, %arg2: i32, %arg3: memref<2xf32, #tpu.memory_space<smem>>) -> (i32, i32, i32, i32) {
    %c0_i32 = arith.constant 0 : i32
    %c0_i32_0 = arith.constant 0 : i32
    return %arg1, %arg0, %arg2, %c0_i32 : i32, i32, i32, i32
  }
  func.func @transform_1(%arg0: i32, %arg1: i32, %arg2: i32, %arg3: memref<2xf32, #tpu.memory_space<smem>>) -> (i32, i32, i32, i32) {
    %c0_i32 = arith.constant 0 : i32
    %c0_i32_0 = arith.constant 0 : i32
    return %arg1, %arg0, %arg2, %c0_i32 : i32, i32, i32, i32
  }
}

</mosaic_0001>

<llo_original>
// kernel: tpu_custom_call.1
$region0: #{tpu_custom_call.1}
  #allocation0 [shape = 'u32[]', space=smem, size = 0x4, offset = 0x4, fixed_abs, tag = 'smem constant byte address 0x4 - core index']
  #allocation1 [shape = 'u32[144,128]{1,0:T(1,128)}', space=vmem, size = 0x12000, scoped, tag = 'internal scratch']
  #allocation2 [shape = 's32[1]{0}', space=sflag, size = 0x4, scoped, tag = 'scoped memory for tpu_custom_call.1']
  #allocation3 [shape = 'u8[512]{0}', space=smem, size = 0x200, scoped, tag = 'prefetched SMEM operand 0']
  %s0 = inlined_call_operand.hbm [shape: f32[2], index: 0, kind: input, shape index: {}]
  %s1 = inlined_call_operand.hbm [shape: f32[2,2,1,512], index: 1, kind: input, shape index: {}]
  %s2 = inlined_call_operand.hbm [shape: f32[2,2,1,512], index: 2, kind: output, shape index: {}]
  %s3 = sld [smem:[#allocation0]]
  $region41: #{tpu_custom_call.1} parent=0
    _
  %s5 = ssub.s32 1, %s3
  %s6 = scalar_select 0, %s5, %s3
  %8 = dma.hbm_to_smem %s0, 16, [#allocation3], [#allocation2]
  %9 = dma.done [#allocation2], 16
  %10 = sfence
  $region1: #{tpu_custom_call.1} parent=0
    #allocation4 [shape = 'u8[4096]{0}', space=vmem, size = 0x1000, scoped, tag = 'input window, operand 1']
    #allocation5 [shape = 's32[2]{0}', space=sflag, size = 0x8, scoped, tag = 'scoped memory for tpu_custom_call.1']
    #allocation6 [shape = 's32[2]{0}', space=sflag, size = 0x8, scoped, tag = 'scoped memory for tpu_custom_call.1']
    #allocation7 [shape = 'u8[4096]{0}', space=vmem, size = 0x1000, scoped, tag = 'output window, operand 0']
    %11 = vsyncpa [#allocation5], 0
    %s12 = scalar_lea.sflag [#allocation5], 1
    %13 = vsyncpa %s12, 0
    %14 = vsyncpa [#allocation6], 0
    %s15 = scalar_lea.sflag [#allocation6], 1
    %16 = vsyncpa %s15, 0
    loop: start=0, step=1, limit=6
    $region2: #{tpu_custom_call.1} parent=1 // loop_pre_header
      _
    $region3: #{tpu_custom_call.1} parent=1 // loop_header
      %s18 = sphi 0, %s22
      %p19 = scmp.ge.s32.totalorder %s18, 6
      %s25 = sphi 0, %s44
      %s26 = sphi 0, %s40
      %s27 = sphi 0, %s36
      %s28 = sphi 0, %s25
      %s29 = sphi 0, %s26
      %s30 = sphi 0, %s27
      %s31 = sphi 0, %s28
      %s32 = sphi 0, %s29
      %s33 = sphi 0, %s30
      %s51 = sphi 0, %s53
      %s54 = sphi 0, %s51
      %s55 = sphi 0, %s54
      %s71 = sphi 0, %s55
      %s81 = sphi 0, %s83
      %s84 = sphi 0, %s81
      %s85 = sphi 0, %s84
      %s101 = sphi 0, %s85
    $region4: #{tpu_custom_call.1} parent=1 // loop_header_branch
      %21 = sbr.rel (%p19) target = $region8
    $region5: #{tpu_custom_call.1} parent=1 // loop_body
      %s23 = ssub.s32 %s18, 1
      %s24 = ssub.s32 %s18, 2
      %s34 = sadd.s32 1, %s27
      %p35 = scmp.ge.s32.totalorder %s34, 1
      %s36 = scalar_select %p35, 0, %s34
      %s37 = sadd.s32 1, %s26
      %s38 = scalar_select %p35, %s37, %s26
      %p39 = scmp.ge.s32.totalorder %s38, 2
      %s40 = scalar_select %p39, 0, %s38
      %s41 = sadd.s32 1, %s25
      %s42 = scalar_select %p39, %s41, %s25
      %p43 = scmp.ge.s32.totalorder %s42, 2
      %s44 = scalar_select %p43, 0, %s42
      %s45 = ssub.s32 %s26, %s40
      %s46 = ssub.s32 %s25, %s44
      %s47 = sor.u32 %s45, %s46
      %s48 = ssub.s32 %s27, %s36
      %s49 = sor.u32 %s47, %s48
      %p50 = scmp.eq.s32.totalorder %s49, 0
      %s52 = sadd.s32 %s51, 1
      %s53 = scalar_select %p50, %s51, %s52
      %p56 = pneg %p50
      %p57 = scmp.eq.s32.totalorder %s18, 3
      %p58 = por %p56, %p57
      %p59 = scmp.ne.s32.totalorder %s51, %s54
      %p60 = scmp.eq.s32.totalorder %s18, 0
      %p61 = por %p59, %p60
      %p62 = scmp.ne.s32.totalorder %s51, %s54
      %p63 = scmp.eq.s32.totalorder %s23, 3
      %p64 = por %p62, %p63
      %p65 = scmp.ne.s32.totalorder %s54, %s55
      %p66 = scmp.eq.s32.totalorder %s23, 0
      %p67 = por %p65, %p66
      %p68 = scmp.ne.s32.totalorder %s54, %s55
      %p69 = scmp.eq.s32.totalorder %s24, 3
      %p70 = por %p68, %p69
      %p72 = scmp.ne.s32.totalorder %s55, %s71
      %p73 = scmp.eq.s32.totalorder %s24, 0
      %p74 = por %p72, %p73
      %s75 = ssub.s32 %s26, %s40
      %s76 = ssub.s32 %s25, %s44
      %s77 = sor.u32 %s75, %s76
      %s78 = ssub.s32 %s27, %s36
      %s79 = sor.u32 %s77, %s78
      %p80 = scmp.eq.s32.totalorder %s79, 0
      %s82 = sadd.s32 %s81, 1
      %s83 = scalar_select %p80, %s81, %s82
      %p86 = pneg %p80
      %p87 = scmp.eq.s32.totalorder %s18, 3
      %p88 = por %p86, %p87
      %p89 = scmp.ne.s32.totalorder %s81, %s84
      %p90 = scmp.eq.s32.totalorder %s18, 0
      %p91 = por %p89, %p90
      %p92 = scmp.ne.s32.totalorder %s81, %s84
      %p93 = scmp.eq.s32.totalorder %s23, 3
      %p94 = por %p92, %p93
      %p95 = scmp.ne.s32.totalorder %s84, %s85
      %p96 = scmp.eq.s32.totalorder %s23, 0
      %p97 = por %p95, %p96
      %p98 = scmp.ne.s32.totalorder %s84, %s85
      %p99 = scmp.eq.s32.totalorder %s24, 3
      %p100 = por %p98, %p99
      %p102 = scmp.ne.s32.totalorder %s85, %s101
      %p103 = scmp.eq.s32.totalorder %s24, 0
      %p104 = por %p102, %p103
      %p105 = scmp.le.s32.totalorder 1, %s18
      %p106 = scmp.lt.s32.totalorder %s18, 5
      %p107 = pnand %p105, %p106
      %p108 = pneg %p107
      // Predicated region
      $region9: #{tpu_custom_call.1} parent=5 // pred_check
        _
      $region10: #{tpu_custom_call.1} parent=5 // pred_check_branch
        %110 = sbr.rel (%p107) target = $region12
      $region11: #{tpu_custom_call.1} parent=5 // pred_region
        %s111 = ssub.s32 %s18, 1
      $region12: #{tpu_custom_call.1} parent=5 // pred_fallthru
        _
      %p112 = scmp.lt.s32.totalorder %s18, 4
      // Predicated region
      $region13: #{tpu_custom_call.1} parent=5 // pred_check
        %p113 = pneg %p112
      $region14: #{tpu_custom_call.1} parent=5 // pred_check_branch
        %115 = sbr.rel (%p113) target = $region16
      $region15: #{tpu_custom_call.1} parent=5 // pred_region
        // Predicated region
        $region17: #{tpu_custom_call.1} parent=15 // pred_check
          %p116 = pneg %p61
        $region18: #{tpu_custom_call.1} parent=15 // pred_check_branch
          %118 = sbr.rel (%p116) target = $region20
        $region19: #{tpu_custom_call.1} parent=15 // pred_region
          %s119 = sand.u32 %s51, 1
          %s120 = scalar_lea.sflag [#allocation5], %s119
          %s121 = sand.u32 %s51, 1
          %s122 = smul.addr %s121, 4
          %s123 = scalar_lea.vmem [#allocation4], %s122
          %s125 = ssub.s32 64, 64
          %126 = vsyncadd %s120, %s125
          %s127 = smul.addr %s27, 4
          %s128 = smul.addr %s25, 4
          %s129 = sadd.s32 %s127, %s128
          %s130 = smul.addr %s26, 8
          %s131 = sadd.s32 %s129, %s130
          %s132 = smul.addr %s131, 16
          %s133 = scalar_lea.hbm %s1, %s132
          %s135 = sshll.u32 %s123, 4
          %s136 = int_to_ptr.vmem [resolvable:$true] %s135
          %138 = dma.hbm_to_vmem [thread:$0]  %s133, 64, %s136, %s120
        $region20: #{tpu_custom_call.1} parent=15 // pred_fallthru
          _
      $region16: #{tpu_custom_call.1} parent=5 // pred_fallthru
        _
      %p139 = scmp.le.s32.totalorder 1, %s18
      %p140 = scmp.lt.s32.totalorder %s18, 5
      %p141 = pnand %p139, %p140
      %p142 = pneg %p141
      // Predicated region
      $region21: #{tpu_custom_call.1} parent=5 // pred_check
        _
      $region22: #{tpu_custom_call.1} parent=5 // pred_check_branch
        %144 = sbr.rel (%p141) target = $region24
      $region23: #{tpu_custom_call.1} parent=5 // pred_region
        %s145 = ssub.s32 %s18, 1
        %s146 = sand.u32 %s54, 1
        %s147 = scalar_lea.sflag [#allocation5], %s146
        %s148 = sand.u32 %s54, 1
        %s149 = smul.addr %s148, 4
        %s150 = scalar_lea.vmem [#allocation4], %s149
        // Predicated region
        $region25: #{tpu_custom_call.1} parent=23 // pred_check
          %p151 = pneg %p67
        $region26: #{tpu_custom_call.1} parent=23 // pred_check_branch
          %153 = sbr.rel (%p151) target = $region28
        $region27: #{tpu_custom_call.1} parent=23 // pred_region
          %154 = dma.done %s147, 64
        $region28: #{tpu_custom_call.1} parent=23 // pred_fallthru
          _
        %s155 = sand.u32 %s54, 1
        %s156 = scalar_lea.sflag [#allocation5], %s155
        %s157 = sand.u32 %s54, 1
        %s158 = smul.addr %s157, 4
        %s159 = scalar_lea.vmem [#allocation4], %s158
        %p160 = pneg %p67
        %p161 = pneg %p64
        %p162 = pneg %p97
        %p163 = pneg %p94
        %s164 = sand.u32 %s84, 1
        %s165 = scalar_lea.sflag [#allocation6], %s164
        %s166 = sand.u32 %s84, 1
        %s167 = smul.addr %s166, 4
        %s168 = scalar_lea.vmem [#allocation7], %s167
        %s169 = sld [smem:[#allocation3 + %s28]]
        %v170 = vld [vmem:[%s150] sm:$0xf]
        %vm171 = vcmp.ge.f32.partialorder %v170, 0.0
        %v172 = vstv %s169
        %v173 = vmul.f32 %v172, %v170
        %v174 = vsel %vm171, %v170, %v173
        %v175 = vlaneseq
        %vm176 = vcmp.ge.s32.totalorder %v175, 0
        %vm177 = vcmp.lt.s32.totalorder %v175, 512
        %vm178 = vmand %vm176, %vm177
        %179 = vst.msk [vmem:[%s168] sm:$0xf] %vm178, %v174
        %s180 = sand.u32 %s84, 1
        %s181 = scalar_lea.sflag [#allocation6], %s180
        %s182 = sand.u32 %s84, 1
        %s183 = smul.addr %s182, 4
        %s184 = scalar_lea.vmem [#allocation7], %s183
        // Predicated region
        $region29: #{tpu_custom_call.1} parent=23 // pred_check
          %p185 = pneg %p94
        $region30: #{tpu_custom_call.1} parent=23 // pred_check_branch
          %187 = sbr.rel (%p185) target = $region32
        $region31: #{tpu_custom_call.1} parent=23 // pred_region
          %s189 = ssub.s32 64, 64
          %190 = vsyncadd %s181, %s189
          %s191 = smul.addr %s30, 4
          %s192 = smul.addr %s28, 4
          %s193 = sadd.s32 %s191, %s192
          %s194 = smul.addr %s29, 8
          %s195 = sadd.s32 %s193, %s194
          %s196 = smul.addr %s195, 16
          %s197 = scalar_lea.hbm %s2, %s196
          %s199 = sshll.u32 %s184, 4
          %s200 = int_to_ptr.vmem [resolvable:$true] %s199
          %202 = dma.vmem_to_hbm [thread:$0]  %s200, 64, %s197, %s181
        $region32: #{tpu_custom_call.1} parent=23 // pred_fallthru
          _
      $region24: #{tpu_custom_call.1} parent=5 // pred_fallthru
        _
      %p203 = scmp.le.s32.totalorder 2, %s18
      // Predicated region
      $region33: #{tpu_custom_call.1} parent=5 // pred_check
        %p204 = pneg %p203
      $region34: #{tpu_custom_call.1} parent=5 // pred_check_branch
        %206 = sbr.rel (%p204) target = $region36
      $region35: #{tpu_custom_call.1} parent=5 // pred_region
        %s207 = ssub.s32 %s18, 2
        // Predicated region
        $region37: #{tpu_custom_call.1} parent=35 // pred_check
          %p208 = pneg %p100
        $region38: #{tpu_custom_call.1} parent=35 // pred_check_branch
          %210 = sbr.rel (%p208) target = $region40
        $region39: #{tpu_custom_call.1} parent=35 // pred_region
          %s211 = sand.u32 %s85, 1
          %s212 = scalar_lea.sflag [#allocation6], %s211
          %s213 = sand.u32 %s85, 1
          %s214 = smul.addr %s213, 4
          %s215 = scalar_lea.vmem [#allocation7], %s214
          %216 = dma.done %s212, 64
        $region40: #{tpu_custom_call.1} parent=35 // pred_fallthru
          _
      $region36: #{tpu_custom_call.1} parent=5 // pred_fallthru
        _
    $region6: #{tpu_custom_call.1} parent=1 // loop_footer
      %s22 = sadd.s32 1, %s18
    $region7: #{tpu_custom_call.1} parent=1 // loop_footer_branch
      %17 = sbr.rel target = $region3
    $region8: #{tpu_custom_call.1} parent=1 // loop_exit
      _
    %217 = vsyncpa [#allocation5], 1
    %s218 = scalar_lea.sflag [#allocation5], 1
    %219 = vsyncpa %s218, 1
    %220 = vsyncpa [#allocation6], 1
    %s221 = scalar_lea.sflag [#allocation6], 1
    %222 = vsyncpa %s221, 1

</llo_original>
